<compile_context>
chip_gen: v6e
topology: v6e:2x2x1
jax: 0.10.0
libtpu: 0.0.40
codegen_flags: <defaults>
</compile_context>

<pallas_src>
import functools
import math

import jax
import jax.numpy as jnp
from jax import lax
from jax.experimental import pallas as pl
from jax.experimental.pallas import tpu as pltpu

_LN_EPS = 1e-12    # matches the custom LayerNorm commonly paired with this module
_SRMS_EPS = 1e-12  # numerical safety only; reference has no eps


def _norm_attention_kernel(q_ref, k_ref, v_ref, bd_ref, gamma_ref, beta_ref,
                           o_ref, *, normalization, d_tensor):
    D = d_tensor

    q = q_ref[...]        # (bb, L, GD)  input dtype (f32 or bf16), lane-dense
    k = k_ref[...]
    v = v_ref[...]
    bd = bd_ref[...]      # (GD, GD) f32: 1.0 where lanes belong to the same head

    # kv_full[b, i, j] = sum_l k[b, l, i] * v[b, l, j]   (contract over length)
    kv_full = lax.dot_general(
        k, v,
        dimension_numbers=(((1,), (1,)), ((0,), (0,))),
        preferred_element_type=jnp.float32)             # (bb, GD, GD), f32 acc

    # Keep only the per-head (D, D) diagonal blocks -> exact per-head k^T @ v.
    # Cast down so the next matmul is MXU-native for bf16 inputs.
    kv = (kv_full * bd[None, :, :]).astype(q.dtype)

    # result[b, l, j] = sum_i q[b, l, i] * kv[b, i, j]
    # N = GD (128/256) fills the MXU column dimension; K = GD.
    result = lax.dot_general(
        q, kv,
        dimension_numbers=(((2,), (1,)), ((0,), (0,))),
        preferred_element_type=jnp.float32)             # (bb, L, GD), f32

    if normalization == 'layer-norm':
        # Per-head LayerNorm over d_tensor (biased variance), affine gamma/beta.
        # Segmented per-head mean / variance computed lane-dense via matmuls
        # against the same-head indicator (stats come back broadcast per head).
        inv_d = 1.0 / D
        mean = lax.dot_general(result, bd,
                               dimension_numbers=(((2,), (0,)), ((), ())),
                               preferred_element_type=jnp.float32) * inv_d
        xc = result - mean
        var = lax.dot_general(xc * xc, bd,
                              dimension_numbers=(((2,), (0,)), ((), ())),
                              preferred_element_type=jnp.float32) * inv_d
        out = xc * lax.rsqrt(var + _LN_EPS)
        out = (out * gamma_ref[...].astype(jnp.float32)
               + beta_ref[...].astype(jnp.float32))
    elif normalization == 'srms':
        # result / (||result||_2 over length / sqrt(d_tensor)); column-wise over
        # the packed lane axis, rsqrt on the EUP.
        sumsq = jnp.sum(result * result, axis=1, keepdims=True)   # (bb, 1, GD)
        out = result * (math.sqrt(D) * lax.rsqrt(sumsq + _SRMS_EPS))
    else:
        raise NotImplementedError('RMS normalization is not implemented yet.')

    o_ref[...] = out.astype(o_ref.dtype)


def _choose_blocks(B, H, L, D, itemsize):
    """Pick (heads_per_block, batch_rows_per_block, vmem_limit_bytes)."""
    # --- generation-aware VMEM limit: ~75% of physical per-core VMEM ---------
    vmem_cap = 64 * 1024 * 1024                    # conservative default (v7x)
    try:
        info = pltpu.get_tpu_info()
        vmem_cap = int(getattr(info, "vmem_capacity_bytes", vmem_cap))
    except Exception:
        pass
    vmem_limit = max(32 * 1024 * 1024,
                     min(vmem_cap * 3 // 4, 100 * 1024 * 1024))

    # --- heads per block: make the packed lane dim a multiple of 128 ---------
    target_n = 256   # MXU column width on v6e/v7x (two passes on v5e's 128 MXU)
    if D % 128 == 0:
        G = 1                                       # already lane-dense per head
    else:
        valid = [g for g in range(1, H + 1)
                 if H % g == 0 and (g * D) % 128 == 0 and g * D <= 512]
        if valid:
            geq = [g for g in valid if g * D >= target_n]
            G = min(geq) if geq else max(valid)
        else:
            G = H    # full trailing dim of the packed array -> still legal block

    # --- batch rows per block, sized against VMEM incl. f32 intermediates ----
    GD = G * D
    sub = 16 if itemsize < 4 else 8                 # bf16 packs 16 sublane rows
    lpad = -(-L // sub) * sub
    lpad32 = -(-L // 8) * 8

    def step_bytes(bb):
        io = 4 * 2 * bb * lpad * GD * itemsize       # q,k,v,out x double buffer
        f32r = bb * lpad32 * GD * 4
        inter = (3 * f32r                            # result + centered + out
                 + (bb + 2) * GD * GD * 4            # kv_full + bd (2 buffers)
                 + bb * GD * GD * itemsize)          # kv cast to input dtype
        return io + inter

    budget = int(vmem_limit * 0.7)
    cand = [b for b in range(1, B + 1) if B % b == 0 and step_bytes(b) <= budget]
    bb = max(cand) if cand else 1
    return G, bb, vmem_limit


def norm_attention(q, k, v, gamma=None, beta=None, normalization='layer-norm'):
    """q, k, v: (B, H, L, D). gamma, beta: (1, D) / (D,) f32 (layer-norm only)."""
    assert normalization in ('layer-norm', 'srms', 'rms')
    if normalization == 'rms':
        raise NotImplementedError('RMS normalization is not implemented yet.')
    # TODO(synk): mask != None path (masked_fill) needs the original score@v form
    # with (q-block, kv-block) tiling + a VMEM accumulator; the block-diagonal
    # k^T@v reassociation used below is exact only for mask=None.

    B, H, L, D = q.shape
    if gamma is None:
        gamma = jnp.ones((1, D), dtype=jnp.float32)
    if beta is None:
        beta = jnp.zeros((1, D), dtype=jnp.float32)
    gamma = jnp.asarray(gamma, dtype=jnp.float32).reshape(1, D)
    beta = jnp.asarray(beta, dtype=jnp.float32).reshape(1, D)

    G, bb, vmem_limit = _choose_blocks(B, H, L, D, q.dtype.itemsize)
    GD = G * D

    # Pack heads into the lane axis: (B, H, L, D) -> (B, L, H*D).  Pure layout
    # plumbing in the wrapper; the kernel then runs fully lane-dense.
    def pack(x):
        return jnp.transpose(x, (0, 2, 1, 3)).reshape(B, L, H * D)

    qp, kp, vp = pack(q), pack(k), pack(v)
    gamma_p = jnp.tile(gamma, (1, H)).reshape(1, 1, H * D)
    beta_p = jnp.tile(beta, (1, H)).reshape(1, 1, H * D)

    # Same-head indicator over one packed group (block-diagonal pattern).
    hid = jnp.arange(GD, dtype=jnp.int32) // D
    bd = (hid[:, None] == hid[None, :]).astype(jnp.float32)      # (GD, GD)

    grid = (B // bb, H // G)
    blk = pl.BlockSpec((bb, L, GD), lambda i, j: (i, 0, j))
    bd_spec = pl.BlockSpec((GD, GD), lambda i, j: (0, 0))
    par = pl.BlockSpec((1, 1, GD), lambda i, j: (0, 0, j))

    kernel = functools.partial(_norm_attention_kernel,
                               normalization=normalization, d_tensor=D)

    out = pl.pallas_call(
        kernel,
        out_shape=jax.ShapeDtypeStruct((B, L, H * D), q.dtype),
        grid_spec=pltpu.PrefetchScalarGridSpec(
            num_scalar_prefetch=0,
            grid=grid,
            in_specs=[blk, blk, blk, bd_spec, par, par],
            out_specs=blk,
        ),
        compiler_params=pltpu.CompilerParams(
            dimension_semantics=("parallel", "parallel"),
            vmem_limit_bytes=vmem_limit),
    )(qp, kp, vp, bd, gamma_p, beta_p)

    # Unpack back to the module's (B, H, L, D) layout.
    return jnp.transpose(out.reshape(B, L, H, D), (0, 2, 1, 3))


def _reference(q, k, v, gamma, beta, normalization='layer-norm'):
    """Pure-JAX reference following the PyTorch module (mask=None)."""
    D = q.shape[-1]
    q32, k32, v32 = (x.astype(jnp.float32) for x in (q, k, v))
    score = jnp.einsum('bhld,bhmd->bhlm', q32, k32,
                       precision=lax.Precision.HIGHEST)
    result = jnp.einsum('bhlm,bhmd->bhld', score, v32,
                        precision=lax.Precision.HIGHEST)
    if normalization == 'layer-norm':
        mean = jnp.mean(result, axis=-1, keepdims=True)
        var = jnp.mean((result - mean) ** 2, axis=-1, keepdims=True)
        out = (result - mean) / jnp.sqrt(var + _LN_EPS)
        return out * gamma.reshape(1, 1, 1, D) + beta.reshape(1, 1, 1, D)
    else:  # srms
        nrm = jnp.sqrt(jnp.sum(result * result, axis=2, keepdims=True))
        return result / (nrm / math.sqrt(D))


if __name__ == "__main__":
    B, H, L, D = 2, 4, 64, 32
    key = jax.random.PRNGKey(0)
    kq, kk, kv_ = jax.random.split(key, 3)
    q = jax.random.normal(kq, (B, H, L, D), dtype=jnp.float32)
    k = jax.random.normal(kk, (B, H, L, D), dtype=jnp.float32)
    v = jax.random.normal(kv_, (B, H, L, D), dtype=jnp.float32)

    # LayerNorm parameters as in the module __init__: gamma=1, beta=0.
    gamma = jnp.ones((1, D), dtype=jnp.float32)
    beta = jnp.zeros((1, D), dtype=jnp.float32)

    # f32, layer-norm
    out_ln = jax.block_until_ready(
        norm_attention(q, k, v, gamma, beta, normalization='layer-norm'))
    ref_ln = _reference(q, k, v, gamma, beta, normalization='layer-norm')
    assert out_ln.shape == (B, H, L, D)
    assert jnp.allclose(out_ln, ref_ln, atol=1e-3, rtol=1e-3), "layer-norm mismatch"

    # f32, srms
    out_sr = jax.block_until_ready(
        norm_attention(q, k, v, normalization='srms'))
    ref_sr = _reference(q, k, v, gamma, beta, normalization='srms')
    assert jnp.allclose(out_sr, ref_sr, atol=1e-3, rtol=1e-3), "srms mismatch"

    # bf16 end-to-end (native bf16 MXU path, f32 accumulation in-kernel)
    qb, kb, vb = (x.astype(jnp.bfloat16) for x in (q, k, v))
    out_bf = jax.block_until_ready(
        norm_attention(qb, kb, vb, gamma, beta, normalization='layer-norm'))
    ref_bf = _reference(qb, kb, vb, gamma, beta, normalization='layer-norm')
    assert jnp.allclose(out_bf.astype(jnp.float32), ref_bf,
                        atol=5e-2, rtol=5e-2), "bf16 layer-norm mismatch"

    print("KERNEL_OK")
</pallas_src>

<mosaic_0001>
module attributes {stable_mosaic.version = 11 : i64} {
  func.func @_norm_attention_kernel(%arg0: i32, %arg1: i32, %arg2: memref<2x64x128xf32, #tpu.memory_space<vmem>>, %arg3: memref<2x64x128xf32, #tpu.memory_space<vmem>>, %arg4: memref<2x64x128xf32, #tpu.memory_space<vmem>>, %arg5: memref<128x128xf32, #tpu.memory_space<vmem>>, %arg6: memref<1x1x128xf32, #tpu.memory_space<vmem>>, %arg7: memref<1x1x128xf32, #tpu.memory_space<vmem>>, %arg8: memref<2x64x128xf32, #tpu.memory_space<vmem>>) attributes {dimension_semantics = [#tpu.dimension_semantics<parallel>, #tpu.dimension_semantics<parallel>], iteration_bounds = array<i64: 1, 1>, scalar_prefetch = 0 : i64, scratch_operands = 0 : i64, tpu.core_type = #tpu.core_type<tc>, window_params = [{transform_indices = @transform_0, window_bounds = array<i64: 2, 64, 128>}, {transform_indices = @transform_1, window_bounds = array<i64: 2, 64, 128>}, {transform_indices = @transform_2, window_bounds = array<i64: 2, 64, 128>}, {pipeline_mode = #tpu.pipeline_mode<synchronous>, transform_indices = @transform_3, window_bounds = array<i64: 128, 128>}, {transform_indices = @transform_4, window_bounds = array<i64: 1, 1, 128>}, {transform_indices = @transform_5, window_bounds = array<i64: 1, 1, 128>}, {transform_indices = @transform_6, window_bounds = array<i64: 2, 64, 128>}]} {
    %c0 = arith.constant 0 : index
    %c0_0 = arith.constant 0 : index
    %c0_1 = arith.constant 0 : index
    %0 = vector.load %arg2[%c0, %c0_0, %c0_1] : memref<2x64x128xf32, #tpu.memory_space<vmem>>, vector<2x64x128xf32>
    %c0_2 = arith.constant 0 : index
    %c0_3 = arith.constant 0 : index
    %c0_4 = arith.constant 0 : index
    %1 = vector.load %arg3[%c0_2, %c0_3, %c0_4] : memref<2x64x128xf32, #tpu.memory_space<vmem>>, vector<2x64x128xf32>
    %c0_5 = arith.constant 0 : index
    %c0_6 = arith.constant 0 : index
    %c0_7 = arith.constant 0 : index
    %2 = vector.load %arg4[%c0_5, %c0_6, %c0_7] : memref<2x64x128xf32, #tpu.memory_space<vmem>>, vector<2x64x128xf32>
    %c0_8 = arith.constant 0 : index
    %c0_9 = arith.constant 0 : index
    %3 = vector.load %arg5[%c0_8, %c0_9] : memref<128x128xf32, #tpu.memory_space<vmem>>, vector<128x128xf32>
    %cst = arith.constant dense<0.000000e+00> : vector<2x128x128xf32>
    %4 = tpu.matmul %1, %2, %cst {dimension_numbers = #tpu.dot_dimension_numbers<[1], [1], [2], [2], [0, 0, 0, 2, 1, 2], [0], [0]>} : vector<2x64x128xf32>, vector<2x64x128xf32>, vector<2x128x128xf32> -> vector<2x128x128xf32>
    %5 = vector.shape_cast %3 : vector<128x128xf32> to vector<1x128x128xf32>
    %6 = vector.broadcast %5 : vector<1x128x128xf32> to vector<2x128x128xf32>
    %7 = arith.mulf %4, %6 : vector<2x128x128xf32>
    %cst_10 = arith.constant dense<0.000000e+00> : vector<2x64x128xf32>
    %8 = tpu.matmul %0, %7, %cst_10 {dimension_numbers = #tpu.dot_dimension_numbers<[2], [1], [1], [2], [0, 0, 0, 1, 1, 2], [0], [0]>} : vector<2x64x128xf32>, vector<2x128x128xf32>, vector<2x64x128xf32> -> vector<2x64x128xf32>
    %cst_11 = arith.constant dense<0.000000e+00> : vector<2x64x128xf32>
    %9 = tpu.matmul %8, %3, %cst_11 {dimension_numbers = #tpu.dot_dimension_numbers<[2], [0], [0, 1], [1], [0, 0, 0, 1, 1, 1], [], []>} : vector<2x64x128xf32>, vector<128x128xf32>, vector<2x64x128xf32> -> vector<2x64x128xf32>
    %cst_12 = arith.constant 3.125000e-02 : f32
    %10 = vector.broadcast %cst_12 : f32 to vector<2x64x128xf32>
    %11 = arith.mulf %9, %10 : vector<2x64x128xf32>
    %12 = arith.subf %8, %11 : vector<2x64x128xf32>
    %13 = arith.mulf %12, %12 : vector<2x64x128xf32>
    %cst_13 = arith.constant dense<0.000000e+00> : vector<2x64x128xf32>
    %14 = tpu.matmul %13, %3, %cst_13 {dimension_numbers = #tpu.dot_dimension_numbers<[2], [0], [0, 1], [1], [0, 0, 0, 1, 1, 1], [], []>} : vector<2x64x128xf32>, vector<128x128xf32>, vector<2x64x128xf32> -> vector<2x64x128xf32>
    %cst_14 = arith.constant 3.125000e-02 : f32
    %15 = vector.broadcast %cst_14 : f32 to vector<2x64x128xf32>
    %16 = arith.mulf %14, %15 : vector<2x64x128xf32>
    %cst_15 = arith.constant 9.99999996E-13 : f32
    %17 = vector.broadcast %cst_15 : f32 to vector<2x64x128xf32>
    %18 = arith.addf %16, %17 : vector<2x64x128xf32>
    %19 = math.rsqrt %18 : vector<2x64x128xf32>
    %20 = arith.mulf %12, %19 : vector<2x64x128xf32>
    %c0_16 = arith.constant 0 : index
    %c0_17 = arith.constant 0 : index
    %c0_18 = arith.constant 0 : index
    %21 = vector.load %arg6[%c0_16, %c0_17, %c0_18] : memref<1x1x128xf32, #tpu.memory_space<vmem>>, vector<1x1x128xf32>
    %22 = vector.broadcast %21 : vector<1x1x128xf32> to vector<2x64x128xf32>
    %23 = arith.mulf %20, %22 : vector<2x64x128xf32>
    %c0_19 = arith.constant 0 : index
    %c0_20 = arith.constant 0 : index
    %c0_21 = arith.constant 0 : index
    %24 = vector.load %arg7[%c0_19, %c0_20, %c0_21] : memref<1x1x128xf32, #tpu.memory_space<vmem>>, vector<1x1x128xf32>
    %25 = vector.broadcast %24 : vector<1x1x128xf32> to vector<2x64x128xf32>
    %26 = arith.addf %23, %25 : vector<2x64x128xf32>
    %c0_22 = arith.constant 0 : index
    %c0_23 = arith.constant 0 : index
    %c0_24 = arith.constant 0 : index
    %27 = vector.load %arg8[%c0_22, %c0_23, %c0_24] : memref<2x64x128xf32, #tpu.memory_space<vmem>>, vector<2x64x128xf32>
    tpu.vector_store %arg8[%c0_22, %c0_23, %c0_24], %26 {strides = array<i32>} : memref<2x64x128xf32, #tpu.memory_space<vmem>>, vector<2x64x128xf32>,
    return
  }
  func.func @transform_0(%arg0: i32, %arg1: i32) -> (i32, i32, i32) {
    %c0_i32 = arith.constant 0 : i32
    %c0_i32_0 = arith.constant 0 : i32
    return %arg0, %c0_i32, %arg1 : i32, i32, i32
  }
  func.func @transform_1(%arg0: i32, %arg1: i32) -> (i32, i32, i32) {
    %c0_i32 = arith.constant 0 : i32
    %c0_i32_0 = arith.constant 0 : i32
    return %arg0, %c0_i32, %arg1 : i32, i32, i32
  }
  func.func @transform_2(%arg0: i32, %arg1: i32) -> (i32, i32, i32) {
    %c0_i32 = arith.constant 0 : i32
    %c0_i32_0 = arith.constant 0 : i32
    return %arg0, %c0_i32, %arg1 : i32, i32, i32
  }
  func.func @transform_3(%arg0: i32, %arg1: i32) -> (i32, i32) {
    %c0_i32 = arith.constant 0 : i32
    %c0_i32_0 = arith.constant 0 : i32
    %c0_i32_1 = arith.constant 0 : i32
    return %c0_i32, %c0_i32_0 : i32, i32
  }
  func.func @transform_4(%arg0: i32, %arg1: i32) -> (i32, i32, i32) {
    %c0_i32 = arith.constant 0 : i32
    %c0_i32_0 = arith.constant 0 : i32
    %c0_i32_1 = arith.constant 0 : i32
    return %c0_i32, %c0_i32_0, %arg1 : i32, i32, i32
  }
  func.func @transform_5(%arg0: i32, %arg1: i32) -> (i32, i32, i32) {
    %c0_i32 = arith.constant 0 : i32
    %c0_i32_0 = arith.constant 0 : i32
    %c0_i32_1 = arith.constant 0 : i32
    return %c0_i32, %c0_i32_0, %arg1 : i32, i32, i32
  }
  func.func @transform_6(%arg0: i32, %arg1: i32) -> (i32, i32, i32) {
    %c0_i32 = arith.constant 0 : i32
    %c0_i32_0 = arith.constant 0 : i32
    return %arg0, %c0_i32, %arg1 : i32, i32, i32
  }
}

</mosaic_0001>

<llo_original>
// kernel: tpu_custom_call.1
$region0: #{tpu_custom_call.1}
  #allocation0 [shape = 'u32[]', space=smem, size = 0x4, offset = 0x4, fixed_abs, tag = 'smem constant byte address 0x4 - core index']
  #allocation1 [shape = 'u32[144,128]{1,0:T(1,128)}', space=vmem, size = 0x12000, scoped, tag = 'internal scratch']
  %s0 = inlined_call_operand.hbm [shape: f32[2,64,128], index: 0, kind: input, shape index: {}]
  %s1 = inlined_call_operand.hbm [shape: f32[2,64,128], index: 1, kind: input, shape index: {}]
  %s2 = inlined_call_operand.hbm [shape: f32[2,64,128], index: 2, kind: input, shape index: {}]
  %s3 = inlined_call_operand.hbm [shape: f32[128,128], index: 3, kind: input, shape index: {}]
  %s4 = inlined_call_operand.vmem [shape: f32[1,1,128], index: 4, kind: input, shape index: {}]
  %s5 = inlined_call_operand.vmem [shape: f32[1,1,128], index: 5, kind: input, shape index: {}]
  %s6 = inlined_call_operand.hbm [shape: f32[2,64,128], index: 6, kind: output, shape index: {}]
  %s7 = sld [smem:[#allocation0]]
  $region50: #{tpu_custom_call.1} parent=0
    _
  %s9 = ssub.s32 1, %s7
  %s10 = scalar_select 0, %s9, %s7
  $region1: #{tpu_custom_call.1} parent=0
    #allocation2 [shape = 'u8[65536]{0}', space=vmem, size = 0x10000, scoped, tag = 'input window, operand 0, single buffered']
    #allocation3 [shape = 's32[1]{0}', space=sflag, size = 0x4, scoped, tag = 'scoped memory for tpu_custom_call.1']
    #allocation4 [shape = 's32[1]{0}', space=sflag, size = 0x4, scoped, tag = 'scoped memory for tpu_custom_call.1']
    #allocation5 [shape = 'u8[65536]{0}', space=vmem, size = 0x10000, scoped, tag = 'input window, operand 1, single buffered']
    #allocation6 [shape = 's32[1]{0}', space=sflag, size = 0x4, scoped, tag = 'scoped memory for tpu_custom_call.1']
    #allocation7 [shape = 'u8[65536]{0}', space=vmem, size = 0x10000, scoped, tag = 'input window, operand 2, single buffered']
    #allocation8 [shape = 'u8[65536]{0}', space=vmem, size = 0x10000, scoped, tag = 'input window, operand 3, single buffered']
    #allocation9 [shape = 's32[1]{0}', space=sflag, size = 0x4, scoped, tag = 'scoped memory for tpu_custom_call.1']
    #allocation10 [shape = 'u8[65536]{0}', space=vmem, size = 0x10000, scoped, tag = 'output window, operand 0, single buffered']
    %11 = vsyncpa [#allocation3], 0
    %12 = vsyncpa [#allocation6], 0
    %13 = vsyncpa [#allocation9], 0
    %14 = vsyncpa [#allocation4], 0
    // Predicated region
    $region2: #{tpu_custom_call.1} parent=1 // pred_check
      _
    $region3: #{tpu_custom_call.1} parent=1 // pred_check_branch
      %16 = sbr.rel (0) target = $region5
    $region4: #{tpu_custom_call.1} parent=1 // pred_region
      %s18 = ssub.s32 2048, 2048
      %19 = vsyncadd [#allocation3], %s18
      %s20 = sshll.u32 [#allocation2], 4
      %s21 = int_to_ptr.vmem [resolvable:$true] %s20
      %26 = dma.hbm_to_vmem [thread:$0]  %s0, 2048, %s21, [#allocation3], 128, 128, 8
    $region5: #{tpu_custom_call.1} parent=1 // pred_fallthru
      _
    // Predicated region
    $region6: #{tpu_custom_call.1} parent=1 // pred_check
      _
    $region7: #{tpu_custom_call.1} parent=1 // pred_check_branch
      %28 = sbr.rel (0) target = $region9
    $region8: #{tpu_custom_call.1} parent=1 // pred_region
      %s30 = ssub.s32 2048, 2048
      %31 = vsyncadd [#allocation6], %s30
      %s32 = sshll.u32 [#allocation5], 4
      %s33 = int_to_ptr.vmem [resolvable:$true] %s32
      %38 = dma.hbm_to_vmem [thread:$0]  %s1, 2048, %s33, [#allocation6], 128, 128, 8
    $region9: #{tpu_custom_call.1} parent=1 // pred_fallthru
      _
    // Predicated region
    $region10: #{tpu_custom_call.1} parent=1 // pred_check
      _
    $region11: #{tpu_custom_call.1} parent=1 // pred_check_branch
      %40 = sbr.rel (0) target = $region13
    $region12: #{tpu_custom_call.1} parent=1 // pred_region
      %s42 = ssub.s32 2048, 2048
      %43 = vsyncadd [#allocation6], %s42
      %s44 = sshll.u32 [#allocation7], 4
      %s45 = int_to_ptr.vmem [resolvable:$true] %s44
      %50 = dma.hbm_to_vmem [thread:$0]  %s2, 2048, %s45, [#allocation6], 128, 128, 8
    $region13: #{tpu_custom_call.1} parent=1 // pred_fallthru
      _
    // Predicated region
    $region14: #{tpu_custom_call.1} parent=1 // pred_check
      _
    $region15: #{tpu_custom_call.1} parent=1 // pred_check_branch
      %52 = sbr.rel (0) target = $region17
    $region16: #{tpu_custom_call.1} parent=1 // pred_region
      %s54 = ssub.s32 2048, 2048
      %55 = vsyncadd [#allocation9], %s54
      %s56 = sshll.u32 [#allocation8], 4
      %s57 = int_to_ptr.vmem [resolvable:$true] %s56
      %62 = dma.hbm_to_vmem [thread:$0]  %s3, 2048, %s57, [#allocation9], 128, 128, 8
    $region17: #{tpu_custom_call.1} parent=1 // pred_fallthru
      _
    // Predicated region
    $region18: #{tpu_custom_call.1} parent=1 // pred_check
      _
    $region19: #{tpu_custom_call.1} parent=1 // pred_check_branch
      %64 = sbr.rel (0) target = $region21
    $region20: #{tpu_custom_call.1} parent=1 // pred_region
      _
    $region21: #{tpu_custom_call.1} parent=1 // pred_fallthru
      _
    // Predicated region
    $region22: #{tpu_custom_call.1} parent=1 // pred_check
      _
    $region23: #{tpu_custom_call.1} parent=1 // pred_check_branch
      %66 = sbr.rel (0) target = $region25
    $region24: #{tpu_custom_call.1} parent=1 // pred_region
      _
    $region25: #{tpu_custom_call.1} parent=1 // pred_fallthru
      _
    // Predicated region
    $region26: #{tpu_custom_call.1} parent=1 // pred_check
      _
    $region27: #{tpu_custom_call.1} parent=1 // pred_check_branch
      %68 = sbr.rel (0) target = $region29
    $region28: #{tpu_custom_call.1} parent=1 // pred_region
      %69 = dma.done [#allocation3], 2048
    $region29: #{tpu_custom_call.1} parent=1 // pred_fallthru
      _
    // Predicated region
    $region30: #{tpu_custom_call.1} parent=1 // pred_check
      _
    $region31: #{tpu_custom_call.1} parent=1 // pred_check_branch
      %71 = sbr.rel (0) target = $region33
    $region32: #{tpu_custom_call.1} parent=1 // pred_region
      %72 = dma.done [#allocation6], 2048
    $region33: #{tpu_custom_call.1} parent=1 // pred_fallthru
      _
    // Predicated region
    $region34: #{tpu_custom_call.1} parent=1 // pred_check
      _
    $region35: #{tpu_custom_call.1} parent=1 // pred_check_branch
      %74 = sbr.rel (0) target = $region37
    $region36: #{tpu_custom_call.1} parent=1 // pred_region
      %75 = dma.done [#allocation6], 2048
    $region37: #{tpu_custom_call.1} parent=1 // pred_fallthru
      _
    // Predicated region
    $region38: #{tpu_custom_call.1} parent=1 // pred_check
      _
    $region39: #{tpu_custom_call.1} parent=1 // pred_check_branch
      %77 = sbr.rel (0) target = $region41
    $region40: #{tpu_custom_call.1} parent=1 // pred_region
      %78 = dma.done [#allocation9], 2048
    $region41: #{tpu_custom_call.1} parent=1 // pred_fallthru
      _
    %v79 = vld [vmem:[#allocation2] sm:$0xff]
    %v80 = vld [vmem:[#allocation2 + $0x8] sm:$0xff]
    %v81 = vld [vmem:[#allocation2 + $0x10] sm:$0xff]
    %v82 = vld [vmem:[#allocation2 + $0x18] sm:$0xff]
    %v83 = vld [vmem:[#allocation2 + $0x20] sm:$0xff]
    %v84 = vld [vmem:[#allocation2 + $0x28] sm:$0xff]
    %v85 = vld [vmem:[#allocation2 + $0x30] sm:$0xff]
    %v86 = vld [vmem:[#allocation2 + $0x38] sm:$0xff]
    %v87 = vld [vmem:[#allocation2 + $0x40] sm:$0xff]
    %v88 = vld [vmem:[#allocation2 + $0x48] sm:$0xff]
    %v89 = vld [vmem:[#allocation2 + $0x50] sm:$0xff]
    %v90 = vld [vmem:[#allocation2 + $0x58] sm:$0xff]
    %v91 = vld [vmem:[#allocation2 + $0x60] sm:$0xff]
    %v92 = vld [vmem:[#allocation2 + $0x68] sm:$0xff]
    %v93 = vld [vmem:[#allocation2 + $0x70] sm:$0xff]
    %v94 = vld [vmem:[#allocation2 + $0x78] sm:$0xff]
    %v95 = vld [vmem:[#allocation5] sm:$0xff]
    %v96 = vld [vmem:[#allocation5 + $0x8] sm:$0xff]
    %v97 = vld [vmem:[#allocation5 + $0x10] sm:$0xff]
    %v98 = vld [vmem:[#allocation5 + $0x18] sm:$0xff]
    %v99 = vld [vmem:[#allocation5 + $0x20] sm:$0xff]
    %v100 = vld [vmem:[#allocation5 + $0x28] sm:$0xff]
    %v101 = vld [vmem:[#allocation5 + $0x30] sm:$0xff]
    %v102 = vld [vmem:[#allocation5 + $0x38] sm:$0xff]
    %v103 = vld [vmem:[#allocation5 + $0x40] sm:$0xff]
    %v104 = vld [vmem:[#allocation5 + $0x48] sm:$0xff]
    %v105 = vld [vmem:[#allocation5 + $0x50] sm:$0xff]
    %v106 = vld [vmem:[#allocation5 + $0x58] sm:$0xff]
    %v107 = vld [vmem:[#allocation5 + $0x60] sm:$0xff]
    %v108 = vld [vmem:[#allocation5 + $0x68] sm:$0xff]
    %v109 = vld [vmem:[#allocation5 + $0x70] sm:$0xff]
    %v110 = vld [vmem:[#allocation5 + $0x78] sm:$0xff]
    %v111 = vld [vmem:[#allocation7] sm:$0xff]
    %v112 = vld [vmem:[#allocation7 + $0x8] sm:$0xff]
    %v113 = vld [vmem:[#allocation7 + $0x10] sm:$0xff]
    %v114 = vld [vmem:[#allocation7 + $0x18] sm:$0xff]
    %v115 = vld [vmem:[#allocation7 + $0x20] sm:$0xff]
    %v116 = vld [vmem:[#allocation7 + $0x28] sm:$0xff]
    %v117 = vld [vmem:[#allocation7 + $0x30] sm:$0xff]
    %v118 = vld [vmem:[#allocation7 + $0x38] sm:$0xff]
    %v119 = vld [vmem:[#allocation7 + $0x40] sm:$0xff]
    %v120 = vld [vmem:[#allocation7 + $0x48] sm:$0xff]
    %v121 = vld [vmem:[#allocation7 + $0x50] sm:$0xff]
    %v122 = vld [vmem:[#allocation7 + $0x58] sm:$0xff]
    %v123 = vld [vmem:[#allocation7 + $0x60] sm:$0xff]
    %v124 = vld [vmem:[#allocation7 + $0x68] sm:$0xff]
    %v125 = vld [vmem:[#allocation7 + $0x70] sm:$0xff]
    %v126 = vld [vmem:[#allocation7 + $0x78] sm:$0xff]
    %v127 = vld [vmem:[#allocation8] sm:$0xff]
    %v128 = vld [vmem:[#allocation8 + $0x8] sm:$0xff]
    %v129 = vld [vmem:[#allocation8 + $0x10] sm:$0xff]
    %v130 = vld [vmem:[#allocation8 + $0x18] sm:$0xff]
    %v131 = vld [vmem:[#allocation8 + $0x20] sm:$0xff]
    %v132 = vld [vmem:[#allocation8 + $0x28] sm:$0xff]
    %v133 = vld [vmem:[#allocation8 + $0x30] sm:$0xff]
    %v134 = vld [vmem:[#allocation8 + $0x38] sm:$0xff]
    %v135 = vld [vmem:[#allocation8 + $0x40] sm:$0xff]
    %v136 = vld [vmem:[#allocation8 + $0x48] sm:$0xff]
    %v137 = vld [vmem:[#allocation8 + $0x50] sm:$0xff]
    %v138 = vld [vmem:[#allocation8 + $0x58] sm:$0xff]
    %v139 = vld [vmem:[#allocation8 + $0x60] sm:$0xff]
    %v140 = vld [vmem:[#allocation8 + $0x68] sm:$0xff]
    %v141 = vld [vmem:[#allocation8 + $0x70] sm:$0xff]
    %v142 = vld [vmem:[#allocation8 + $0x78] sm:$0xff]
    %143 = vxpose.xlu0.b32.start [1/16] %v95, 128
    %144 = vxpose.xlu0.b32.cont [2/16] %v96, 128
    %145 = vxpose.xlu0.b32.cont [3/16] %v97, 128
    %146 = vxpose.xlu0.b32.cont [4/16] %v98, 128
    %147 = vxpose.xlu0.b32.cont [5/16] %v99, 128
    %148 = vxpose.xlu0.b32.cont [6/16] %v100, 128
    %149 = vxpose.xlu0.b32.cont [7/16] %v101, 128
    %150 = vxpose.xlu0.b32.cont [8/16] %v102, 128
    %151 = vxpose.xlu0.b32.cont [9/16] 0.0, 128
    %152 = vxpose.xlu0.b32.cont [10/16] 0.0, 128
    %153 = vxpose.xlu0.b32.cont [11/16] 0.0, 128
    %154 = vxpose.xlu0.b32.cont [12/16] 0.0, 128
    %155 = vxpose.xlu0.b32.cont [13/16] 0.0, 128
    %156 = vxpose.xlu0.b32.cont [14/16] 0.0, 128
    %157 = vxpose.xlu0.b32.cont [15/16] 0.0, 128
    %158 = vxpose.xlu0.b32.end [16/16] 0.0, 128
    %v159 = vpop.trf.xlu0
    %v160 = vpop.trf.xlu0
    %v161 = vpop.trf.xlu0
    %v162 = vpop.trf.xlu0
    %v163 = vpop.trf.xlu0
    %v164 = vpop.trf.xlu0
    %v165 = vpop.trf.xlu0
    %v166 = vpop.trf.xlu0
    %v167 = vpop.trf.xlu0
    %v168 = vpop.trf.xlu0
    %v169 = vpop.trf.xlu0
    %v170 = vpop.trf.xlu0
    %v171 = vpop.trf.xlu0
    %v172 = vpop.trf.xlu0
    %v173 = vpop.trf.xlu0
    %v174 = vpop.trf.xlu0
    %vm175 = vcmask 523264
    %v177 = vsel %vm175, %v159, 0
    %v180 = vsel %vm175, %v160, 0
    %v183 = vsel %vm175, %v161, 0
    %v186 = vsel %vm175, %v162, 0
    %v189 = vsel %vm175, %v163, 0
    %v192 = vsel %vm175, %v164, 0
    %v195 = vsel %vm175, %v165, 0
    %v198 = vsel %vm175, %v166, 0
    %v201 = vsel %vm175, %v167, 0
    %v204 = vsel %vm175, %v168, 0
    %v207 = vsel %vm175, %v169, 0
    %v210 = vsel %vm175, %v170, 0
    %v213 = vsel %vm175, %v171, 0
    %v216 = vsel %vm175, %v172, 0
    %v219 = vsel %vm175, %v173, 0
    %v222 = vsel %vm175, %v174, 0
    %224 = vmatprep.subr.mxu0 0.0
    %225 = vmatpush1.msra.mxu0 0.0
    %226 = vmatprep.subr.mxu0 0.0
    %227 = vmatpush1.msra.mxu0 0.0
    %228 = vmatprep.subr.mxu0 0.0
    %229 = vmatpush1.msra.mxu0 0.0
    %230 = vmatprep.subr.mxu0 0.0
    %231 = vmatpush1.msra.mxu0 0.0
    %232 = vmatprep.subr.mxu0 0.0
    %233 = vmatpush1.msra.mxu0 0.0
    %234 = vmatprep.subr.mxu0 0.0
    %235 = vmatpush1.msra.mxu0 0.0
    %236 = vmatprep.subr.mxu0 0.0
    %237 = vmatpush1.msra.mxu0 0.0
    %238 = vmatprep.subr.mxu0 0.0
    %239 = vmatpush1.msra.mxu0 0.0
    %240 = vmatprep.subr.mxu0 0.0
    %241 = vmatpush1.msra.mxu0 %v118
    %242 = vmatprep.subr.mxu0 0.0
    %243 = vmatpush1.msra.mxu0 %v117
    %244 = vmatprep.subr.mxu0 0.0
    %245 = vmatpush1.msra.mxu0 %v116
    %246 = vmatprep.subr.mxu0 0.0
    %247 = vmatpush1.msra.mxu0 %v115
    %248 = vmatprep.subr.mxu0 0.0
    %249 = vmatpush1.msra.mxu0 %v114
    %250 = vmatprep.subr.mxu0 0.0
    %251 = vmatpush1.msra.mxu0 %v113
    %252 = vmatprep.subr.mxu0 0.0
    %253 = vmatpush1.msra.mxu0 %v112
    %254 = vmatprep.subr.mxu0 0.0
    %255 = vmatpush1.msra.mxu0 %v111
    %256 = vmatprep.subr.mxu0 0.0
    %257 = vmatpush2.msra.mxu0 0.0
    %258 = vmatprep.subr.mxu0 0.0
    %259 = vmatpush2.msra.mxu0 0.0
    %260 = vmatprep.subr.mxu0 0.0
    %261 = vmatpush2.msra.mxu0 0.0
    %262 = vmatprep.subr.mxu0 0.0
    %263 = vmatpush2.msra.mxu0 0.0
    %264 = vmatprep.subr.mxu0 0.0
    %265 = vmatpush2.msra.mxu0 0.0
    %266 = vmatprep.subr.mxu0 0.0
    %267 = vmatpush2.msra.mxu0 0.0
    %268 = vmatprep.subr.mxu0 0.0
    %269 = vmatpush2.msra.mxu0 0.0
    %270 = vmatprep.subr.mxu0 0.0
    %271 = vmatpush2.msra.mxu0 0.0
    %272 = vmatprep.subr.mxu0 0.0
    %273 = vmatpush2.msra.mxu0 0.0
    %274 = vmatprep.subr.mxu0 0.0
    %275 = vmatpush2.msra.mxu0 0.0
    %276 = vmatprep.subr.mxu0 0.0
    %277 = vmatpush2.msra.mxu0 0.0
    %278 = vmatprep.subr.mxu0 0.0
    %279 = vmatpush2.msra.mxu0 0.0
    %280 = vmatprep.subr.mxu0 0.0
    %281 = vmatpush2.msra.mxu0 0.0
    %282 = vmatprep.subr.mxu0 0.0
    %283 = vmatpush2.msra.mxu0 0.0
    %284 = vmatprep.subr.mxu0 0.0
    %285 = vmatpush2.msra.mxu0 0.0
    %286 = vmatprep.subr.mxu0 0.0
    %287 = vmatpush2.msra.mxu0 0.0
    %288 = vmatprep.mubr.f32.mxu0 0.0
    %289 = vmatmul.mubr.f32.gmra.mxu0 %v177
    %v290 = vpop.f32.mrf.mxu0
    %v291 = vadd.f32 0.0, %v290
    %v292 = vpop.f32.mrf.mxu0
    %293 = vmatprep.mubr.f32.mxu0 0.0
    %294 = vmatmul.mubr.f32.gmra.mxu0 %v180
    %v295 = vpop.f32.mrf.mxu0
    %v296 = vadd.f32 0.0, %v295
    %v297 = vpop.f32.mrf.mxu0
    %298 = vmatprep.mubr.f32.mxu0 0.0
    %299 = vmatmul.mubr.f32.gmra.mxu0 %v183
    %v300 = vpop.f32.mrf.mxu0
    %v301 = vadd.f32 0.0, %v300
    %v302 = vpop.f32.mrf.mxu0
    %303 = vmatprep.mubr.f32.mxu0 0.0
    %304 = vmatmul.mubr.f32.gmra.mxu0 %v186
    %v305 = vpop.f32.mrf.mxu0
    %v306 = vadd.f32 0.0, %v305
    %v307 = vpop.f32.mrf.mxu0
    %308 = vmatprep.mubr.f32.mxu0 0.0
    %309 = vmatmul.mubr.f32.gmra.mxu0 %v189
    %v310 = vpop.f32.mrf.mxu0
    %v311 = vadd.f32 0.0, %v310
    %v312 = vpop.f32.mrf.mxu0
    %313 = vmatprep.mubr.f32.mxu0 0.0
    %314 = vmatmul.mubr.f32.gmra.mxu0 %v192
    %v315 = vpop.f32.mrf.mxu0
    %v316 = vadd.f32 0.0, %v315
    %v317 = vpop.f32.mrf.mxu0
    %318 = vmatprep.mubr.f32.mxu0 0.0
    %319 = vmatmul.mubr.f32.gmra.mxu0 %v195
    %v320 = vpop.f32.mrf.mxu0
    %v321 = vadd.f32 0.0, %v320
    %v322 = vpop.f32.mrf.mxu0
    %323 = vmatprep.mubr.f32.mxu0 0.0
    %324 = vmatmul.mubr.f32.gmra.mxu0 %v198
    %v325 = vpop.f32.mrf.mxu0
    %v326 = vadd.f32 0.0, %v325
    %v327 = vpop.f32.mrf.mxu0
    %328 = vmatprep.mubr.f32.mxu0 0.0
    %329 = vmatmul.mubr.f32.gmra.mxu0 %v201
    %v330 = vpop.f32.mrf.mxu0
    %v331 = vadd.f32 0.0, %v330
    %v332 = vpop.f32.mrf.mxu0
    %333 = vmatprep.mubr.f32.mxu0 0.0
    %334 = vmatmul.mubr.f32.gmra.mxu0 %v204
    %v335 = vpop.f32.mrf.mxu0
    %v336 = vadd.f32 0.0, %v335
    %v337 = vpop.f32.mrf.mxu0
    %338 = vmatprep.mubr.f32.mxu0 0.0
    %339 = vmatmul.mubr.f32.gmra.mxu0 %v207
    %v340 = vpop.f32.mrf.mxu0
    %v341 = vadd.f32 0.0, %v340
    %v342 = vpop.f32.mrf.mxu0
    %343 = vmatprep.mubr.f32.mxu0 0.0
    %344 = vmatmul.mubr.f32.gmra.mxu0 %v210
    %v345 = vpop.f32.mrf.mxu0
    %v346 = vadd.f32 0.0, %v345
    %v347 = vpop.f32.mrf.mxu0
    %348 = vmatprep.mubr.f32.mxu0 0.0
    %349 = vmatmul.mubr.f32.gmra.mxu0 %v213
    %v350 = vpop.f32.mrf.mxu0
    %v351 = vadd.f32 0.0, %v350
    %v352 = vpop.f32.mrf.mxu0
    %353 = vmatprep.mubr.f32.mxu0 0.0
    %354 = vmatmul.mubr.f32.gmra.mxu0 %v216
    %v355 = vpop.f32.mrf.mxu0
    %v356 = vadd.f32 0.0, %v355
    %v357 = vpop.f32.mrf.mxu0
    %358 = vmatprep.mubr.f32.mxu0 0.0
    %359 = vmatmul.mubr.f32.gmra.mxu0 %v219
    %v360 = vpop.f32.mrf.mxu0
    %v361 = vadd.f32 0.0, %v360
    %v362 = vpop.f32.mrf.mxu0
    %363 = vmatprep.mubr.f32.mxu0 0.0
    %364 = vmatmul.mubr.f32.gmra.mxu0 %v222
    %v365 = vpop.f32.mrf.mxu0
    %v366 = vadd.f32 0.0, %v365
    %v367 = vpop.f32.mrf.mxu0
    %368 = vdwg.mxu0
    %369 = vxpose.xlu0.b32.start [1/16] %v103, 128
    %370 = vxpose.xlu0.b32.cont [2/16] %v104, 128
    %371 = vxpose.xlu0.b32.cont [3/16] %v105, 128
    %372 = vxpose.xlu0.b32.cont [4/16] %v106, 128
    %373 = vxpose.xlu0.b32.cont [5/16] %v107, 128
    %374 = vxpose.xlu0.b32.cont [6/16] %v108, 128
    %375 = vxpose.xlu0.b32.cont [7/16] %v109, 128
    %376 = vxpose.xlu0.b32.cont [8/16] %v110, 128
    %377 = vxpose.xlu0.b32.cont [9/16] 0.0, 128
    %378 = vxpose.xlu0.b32.cont [10/16] 0.0, 128
    %379 = vxpose.xlu0.b32.cont [11/16] 0.0, 128
    %380 = vxpose.xlu0.b32.cont [12/16] 0.0, 128
    %381 = vxpose.xlu0.b32.cont [13/16] 0.0, 128
    %382 = vxpose.xlu0.b32.cont [14/16] 0.0, 128
    %383 = vxpose.xlu0.b32.cont [15/16] 0.0, 128
    %384 = vxpose.xlu0.b32.end [16/16] 0.0, 128
    %v385 = vpop.trf.xlu0
    %v386 = vpop.trf.xlu0
    %v387 = vpop.trf.xlu0
    %v388 = vpop.trf.xlu0
    %v389 = vpop.trf.xlu0
    %v390 = vpop.trf.xlu0
    %v391 = vpop.trf.xlu0
    %v392 = vpop.trf.xlu0
    %v393 = vpop.trf.xlu0
    %v394 = vpop.trf.xlu0
    %v395 = vpop.trf.xlu0
    %v396 = vpop.trf.xlu0
    %v397 = vpop.trf.xlu0
    %v398 = vpop.trf.xlu0
    %v399 = vpop.trf.xlu0
    %v400 = vpop.trf.xlu0
    %v402 = vsel %vm175, %v385, 0
    %v405 = vsel %vm175, %v386, 0
    %v408 = vsel %vm175, %v387, 0
    %v411 = vsel %vm175, %v388, 0
    %v414 = vsel %vm175, %v389, 0
    %v417 = vsel %vm175, %v390, 0
    %v420 = vsel %vm175, %v391, 0
    %v423 = vsel %vm175, %v392, 0
    %v426 = vsel %vm175, %v393, 0
    %v429 = vsel %vm175, %v394, 0
    %v432 = vsel %vm175, %v395, 0
    %v435 = vsel %vm175, %v396, 0
    %v438 = vsel %vm175, %v397, 0
    %v441 = vsel %vm175, %v398, 0
    %v444 = vsel %vm175, %v399, 0
    %v447 = vsel %vm175, %v400, 0
    %449 = vmatprep.subr.mxu0 0.0
    %450 = vmatpush1.msra.mxu0 0.0
    %451 = vmatprep.subr.mxu0 0.0
    %452 = vmatpush1.msra.mxu0 0.0
    %453 = vmatprep.subr.mxu0 0.0
    %454 = vmatpush1.msra.mxu0 0.0
    %455 = vmatprep.subr.mxu0 0.0
    %456 = vmatpush1.msra.mxu0 0.0
    %457 = vmatprep.subr.mxu0 0.0
    %458 = vmatpush1.msra.mxu0 0.0
    %459 = vmatprep.subr.mxu0 0.0
    %460 = vmatpush1.msra.mxu0 0.0
    %461 = vmatprep.subr.mxu0 0.0
    %462 = vmatpush1.msra.mxu0 0.0
    %463 = vmatprep.subr.mxu0 0.0
    %464 = vmatpush1.msra.mxu0 0.0
    %465 = vmatprep.subr.mxu0 0.0
    %466 = vmatpush1.msra.mxu0 %v126
    %467 = vmatprep.subr.mxu0 0.0
    %468 = vmatpush1.msra.mxu0 %v125
    %469 = vmatprep.subr.mxu0 0.0
    %470 = vmatpush1.msra.mxu0 %v124
    %471 = vmatprep.subr.mxu0 0.0
    %472 = vmatpush1.msra.mxu0 %v123
    %473 = vmatprep.subr.mxu0 0.0
    %474 = vmatpush1.msra.mxu0 %v122
    %475 = vmatprep.subr.mxu0 0.0
    %476 = vmatpush1.msra.mxu0 %v121
    %477 = vmatprep.subr.mxu0 0.0
    %478 = vmatpush1.msra.mxu0 %v120
    %479 = vmatprep.subr.mxu0 0.0
    %480 = vmatpush1.msra.mxu0 %v119
    %481 = vmatprep.subr.mxu0 0.0
    %482 = vmatpush2.msra.mxu0 0.0
    %483 = vmatprep.subr.mxu0 0.0
    %484 = vmatpush2.msra.mxu0 0.0
    %485 = vmatprep.subr.mxu0 0.0
    %486 = vmatpush2.msra.mxu0 0.0
    %487 = vmatprep.subr.mxu0 0.0
    %488 = vmatpush2.msra.mxu0 0.0
    %489 = vmatprep.subr.mxu0 0.0
    %490 = vmatpush2.msra.mxu0 0.0
    %491 = vmatprep.subr.mxu0 0.0
    %492 = vmatpush2.msra.mxu0 0.0
    %493 = vmatprep.subr.mxu0 0.0
    %494 = vmatpush2.msra.mxu0 0.0
    %495 = vmatprep.subr.mxu0 0.0
    %496 = vmatpush2.msra.mxu0 0.0
    %497 = vmatprep.subr.mxu0 0.0
    %498 = vmatpush2.msra.mxu0 0.0
    %499 = vmatprep.subr.mxu0 0.0
    %500 = vmatpush2.msra.mxu0 0.0
    %501 = vmatprep.subr.mxu0 0.0
    %502 = vmatpush2.msra.mxu0 0.0
    %503 = vmatprep.subr.mxu0 0.0
    %504 = vmatpush2.msra.mxu0 0.0
    %505 = vmatprep.subr.mxu0 0.0
    %506 = vmatpush2.msra.mxu0 0.0
    %507 = vmatprep.subr.mxu0 0.0
    %508 = vmatpush2.msra.mxu0 0.0
    %509 = vmatprep.subr.mxu0 0.0
    %510 = vmatpush2.msra.mxu0 0.0
    %511 = vmatprep.subr.mxu0 0.0
    %512 = vmatpush2.msra.mxu0 0.0
    %513 = vmatprep.mubr.f32.mxu0 0.0
    %514 = vmatmul.mubr.f32.gmra.mxu0 %v402
    %v515 = vpop.f32.mrf.mxu0
    %v516 = vadd.f32 0.0, %v515
    %v517 = vpop.f32.mrf.mxu0
    %518 = vmatprep.mubr.f32.mxu0 0.0
    %519 = vmatmul.mubr.f32.gmra.mxu0 %v405
    %v520 = vpop.f32.mrf.mxu0
    %v521 = vadd.f32 0.0, %v520
    %v522 = vpop.f32.mrf.mxu0
    %523 = vmatprep.mubr.f32.mxu0 0.0
    %524 = vmatmul.mubr.f32.gmra.mxu0 %v408
    %v525 = vpop.f32.mrf.mxu0
    %v526 = vadd.f32 0.0, %v525
    %v527 = vpop.f32.mrf.mxu0
    %528 = vmatprep.mubr.f32.mxu0 0.0
    %529 = vmatmul.mubr.f32.gmra.mxu0 %v411
    %v530 = vpop.f32.mrf.mxu0
    %v531 = vadd.f32 0.0, %v530
    %v532 = vpop.f32.mrf.mxu0
    %533 = vmatprep.mubr.f32.mxu0 0.0
    %534 = vmatmul.mubr.f32.gmra.mxu0 %v414
    %v535 = vpop.f32.mrf.mxu0
    %v536 = vadd.f32 0.0, %v535
    %v537 = vpop.f32.mrf.mxu0
    %538 = vmatprep.mubr.f32.mxu0 0.0
    %539 = vmatmul.mubr.f32.gmra.mxu0 %v417
    %v540 = vpop.f32.mrf.mxu0
    %v541 = vadd.f32 0.0, %v540
    %v542 = vpop.f32.mrf.mxu0
    %543 = vmatprep.mubr.f32.mxu0 0.0
    %544 = vmatmul.mubr.f32.gmra.mxu0 %v420
    %v545 = vpop.f32.mrf.mxu0
    %v546 = vadd.f32 0.0, %v545
    %v547 = vpop.f32.mrf.mxu0
    %548 = vmatprep.mubr.f32.mxu0 0.0
    %549 = vmatmul.mubr.f32.gmra.mxu0 %v423
    %v550 = vpop.f32.mrf.mxu0
    %v551 = vadd.f32 0.0, %v550
    %v552 = vpop.f32.mrf.mxu0
    %553 = vmatprep.mubr.f32.mxu0 0.0
    %554 = vmatmul.mubr.f32.gmra.mxu0 %v426
    %v555 = vpop.f32.mrf.mxu0
    %v556 = vadd.f32 0.0, %v555
    %v557 = vpop.f32.mrf.mxu0
    %558 = vmatprep.mubr.f32.mxu0 0.0
    %559 = vmatmul.mubr.f32.gmra.mxu0 %v429
    %v560 = vpop.f32.mrf.mxu0
    %v561 = vadd.f32 0.0, %v560
    %v562 = vpop.f32.mrf.mxu0
    %563 = vmatprep.mubr.f32.mxu0 0.0
    %564 = vmatmul.mubr.f32.gmra.mxu0 %v432
    %v565 = vpop.f32.mrf.mxu0
    %v566 = vadd.f32 0.0, %v565
    %v567 = vpop.f32.mrf.mxu0
    %568 = vmatprep.mubr.f32.mxu0 0.0
    %569 = vmatmul.mubr.f32.gmra.mxu0 %v435
    %v570 = vpop.f32.mrf.mxu0
    %v571 = vadd.f32 0.0, %v570
    %v572 = vpop.f32.mrf.mxu0
    %573 = vmatprep.mubr.f32.mxu0 0.0
    %574 = vmatmul.mubr.f32.gmra.mxu0 %v438
    %v575 = vpop.f32.mrf.mxu0
    %v576 = vadd.f32 0.0, %v575
    %v577 = vpop.f32.mrf.mxu0
    %578 = vmatprep.mubr.f32.mxu0 0.0
    %579 = vmatmul.mubr.f32.gmra.mxu0 %v441
    %v580 = vpop.f32.mrf.mxu0
    %v581 = vadd.f32 0.0, %v580
    %v582 = vpop.f32.mrf.mxu0
    %583 = vmatprep.mubr.f32.mxu0 0.0
    %584 = vmatmul.mubr.f32.gmra.mxu0 %v444
    %v585 = vpop.f32.mrf.mxu0
    %v586 = vadd.f32 0.0, %v585
    %v587 = vpop.f32.mrf.mxu0
    %588 = vmatprep.mubr.f32.mxu0 0.0
    %589 = vmatmul.mubr.f32.gmra.mxu0 %v447
    %v590 = vpop.f32.mrf.mxu0
    %v591 = vadd.f32 0.0, %v590
    %v592 = vpop.f32.mrf.mxu0
    %593 = vdwg.mxu0
    %v594 = vmul.f32 %v291, %v127
    %v595 = vmul.f32 %v296, %v128
    %v596 = vmul.f32 %v301, %v129
    %v597 = vmul.f32 %v306, %v130
    %v598 = vmul.f32 %v311, %v131
    %v599 = vmul.f32 %v316, %v132
    %v600 = vmul.f32 %v321, %v133
    %v601 = vmul.f32 %v326, %v134
    %v602 = vmul.f32 %v331, %v135
    %v603 = vmul.f32 %v336, %v136
    %v604 = vmul.f32 %v341, %v137
    %v605 = vmul.f32 %v346, %v138
    %v606 = vmul.f32 %v351, %v139
    %v607 = vmul.f32 %v356, %v140
    %v608 = vmul.f32 %v361, %v141
    %v609 = vmul.f32 %v366, %v142
    %v610 = vmul.f32 %v516, %v127
    %v611 = vmul.f32 %v521, %v128
    %v612 = vmul.f32 %v526, %v129
    %v613 = vmul.f32 %v531, %v130
    %v614 = vmul.f32 %v536, %v131
    %v615 = vmul.f32 %v541, %v132
    %v616 = vmul.f32 %v546, %v133
    %v617 = vmul.f32 %v551, %v134
    %v618 = vmul.f32 %v556, %v135
    %v619 = vmul.f32 %v561, %v136
    %v620 = vmul.f32 %v566, %v137
    %v621 = vmul.f32 %v571, %v138
    %v622 = vmul.f32 %v576, %v139
    %v623 = vmul.f32 %v581, %v140
    %v624 = vmul.f32 %v586, %v141
    %v625 = vmul.f32 %v591, %v142
    %626 = vmatprep.subr.mxu0 0.0
    %627 = vmatpush1.msra.mxu0 %v609
    %628 = vmatprep.subr.mxu0 0.0
    %629 = vmatpush1.msra.mxu0 %v608
    %630 = vmatprep.subr.mxu0 0.0
    %631 = vmatpush1.msra.mxu0 %v607
    %632 = vmatprep.subr.mxu0 0.0
    %633 = vmatpush1.msra.mxu0 %v606
    %634 = vmatprep.subr.mxu0 0.0
    %635 = vmatpush1.msra.mxu0 %v605
    %636 = vmatprep.subr.mxu0 0.0
    %637 = vmatpush1.msra.mxu0 %v604
    %638 = vmatprep.subr.mxu0 0.0
    %639 = vmatpush1.msra.mxu0 %v603
    %640 = vmatprep.subr.mxu0 0.0
    %641 = vmatpush1.msra.mxu0 %v602
    %642 = vmatprep.subr.mxu0 0.0
    %643 = vmatpush1.msra.mxu0 %v601
    %644 = vmatprep.subr.mxu0 0.0
    %645 = vmatpush1.msra.mxu0 %v600
    %646 = vmatprep.subr.mxu0 0.0
    %647 = vmatpush1.msra.mxu0 %v599
    %648 = vmatprep.subr.mxu0 0.0
    %649 = vmatpush1.msra.mxu0 %v598
    %650 = vmatprep.subr.mxu0 0.0
    %651 = vmatpush1.msra.mxu0 %v597
    %652 = vmatprep.subr.mxu0 0.0
    %653 = vmatpush1.msra.mxu0 %v596
    %654 = vmatprep.subr.mxu0 0.0
    %655 = vmatpush1.msra.mxu0 %v595
    %656 = vmatprep.subr.mxu0 0.0
    %657 = vmatpush1.msra.mxu0 %v594
    %658 = vmatprep.subr.mxu0 0.0
    %659 = vmatpush2.msra.mxu0 0.0
    %660 = vmatprep.subr.mxu0 0.0
    %661 = vmatpush2.msra.mxu0 0.0
    %662 = vmatprep.subr.mxu0 0.0
    %663 = vmatpush2.msra.mxu0 0.0
    %664 = vmatprep.subr.mxu0 0.0
    %665 = vmatpush2.msra.mxu0 0.0
    %666 = vmatprep.subr.mxu0 0.0
    %667 = vmatpush2.msra.mxu0 0.0
    %668 = vmatprep.subr.mxu0 0.0
    %669 = vmatpush2.msra.mxu0 0.0
    %670 = vmatprep.subr.mxu0 0.0
    %671 = vmatpush2.msra.mxu0 0.0
    %672 = vmatprep.subr.mxu0 0.0
    %673 = vmatpush2.msra.mxu0 0.0
    %674 = vmatprep.subr.mxu0 0.0
    %675 = vmatpush2.msra.mxu0 0.0
    %676 = vmatprep.subr.mxu0 0.0
    %677 = vmatpush2.msra.mxu0 0.0
    %678 = vmatprep.subr.mxu0 0.0
    %679 = vmatpush2.msra.mxu0 0.0
    %680 = vmatprep.subr.mxu0 0.0
    %681 = vmatpush2.msra.mxu0 0.0
    %682 = vmatprep.subr.mxu0 0.0
    %683 = vmatpush2.msra.mxu0 0.0
    %684 = vmatprep.subr.mxu0 0.0
    %685 = vmatpush2.msra.mxu0 0.0
    %686 = vmatprep.subr.mxu0 0.0
    %687 = vmatpush2.msra.mxu0 0.0
    %688 = vmatprep.subr.mxu0 0.0
    %689 = vmatpush2.msra.mxu0 0.0
    %690 = vmatprep.mubr.f32.mxu0 0.0
    %691 = vmatmul.mubr.f32.gmra.mxu0 %v79
    %v692 = vpop.f32.mrf.mxu0
    %v693 = vadd.f32 0.0, %v692
    %v694 = vpop.f32.mrf.mxu0
    %695 = vmatprep.mubr.f32.mxu0 0.0
    %696 = vmatmul.mubr.f32.gmra.mxu0 %v80
    %v697 = vpop.f32.mrf.mxu0
    %v698 = vadd.f32 0.0, %v697
    %v699 = vpop.f32.mrf.mxu0
    %700 = vmatprep.mubr.f32.mxu0 0.0
    %701 = vmatmul.mubr.f32.gmra.mxu0 %v81
    %v702 = vpop.f32.mrf.mxu0
    %v703 = vadd.f32 0.0, %v702
    %v704 = vpop.f32.mrf.mxu0
    %705 = vmatprep.mubr.f32.mxu0 0.0
    %706 = vmatmul.mubr.f32.gmra.mxu0 %v82
    %v707 = vpop.f32.mrf.mxu0
    %v708 = vadd.f32 0.0, %v707
    %v709 = vpop.f32.mrf.mxu0
    %710 = vmatprep.mubr.f32.mxu0 0.0
    %711 = vmatmul.mubr.f32.gmra.mxu0 %v83
    %v712 = vpop.f32.mrf.mxu0
    %v713 = vadd.f32 0.0, %v712
    %v714 = vpop.f32.mrf.mxu0
    %715 = vmatprep.mubr.f32.mxu0 0.0
    %716 = vmatmul.mubr.f32.gmra.mxu0 %v84
    %v717 = vpop.f32.mrf.mxu0
    %v718 = vadd.f32 0.0, %v717
    %v719 = vpop.f32.mrf.mxu0
    %720 = vmatprep.mubr.f32.mxu0 0.0
    %721 = vmatmul.mubr.f32.gmra.mxu0 %v85
    %v722 = vpop.f32.mrf.mxu0
    %v723 = vadd.f32 0.0, %v722
    %v724 = vpop.f32.mrf.mxu0
    %725 = vmatprep.mubr.f32.mxu0 0.0
    %726 = vmatmul.mubr.f32.gmra.mxu0 %v86
    %v727 = vpop.f32.mrf.mxu0
    %v728 = vadd.f32 0.0, %v727
    %v729 = vpop.f32.mrf.mxu0
    %730 = vdwg.mxu0
    %731 = vmatprep.subr.mxu0 0.0
    %732 = vmatpush1.msra.mxu0 %v625
    %733 = vmatprep.subr.mxu0 0.0
    %734 = vmatpush1.msra.mxu0 %v624
    %735 = vmatprep.subr.mxu0 0.0
    %736 = vmatpush1.msra.mxu0 %v623
    %737 = vmatprep.subr.mxu0 0.0
    %738 = vmatpush1.msra.mxu0 %v622
    %739 = vmatprep.subr.mxu0 0.0
    %740 = vmatpush1.msra.mxu0 %v621
    %741 = vmatprep.subr.mxu0 0.0
    %742 = vmatpush1.msra.mxu0 %v620
    %743 = vmatprep.subr.mxu0 0.0
    %744 = vmatpush1.msra.mxu0 %v619
    %745 = vmatprep.subr.mxu0 0.0
    %746 = vmatpush1.msra.mxu0 %v618
    %747 = vmatprep.subr.mxu0 0.0
    %748 = vmatpush1.msra.mxu0 %v617
    %749 = vmatprep.subr.mxu0 0.0
    %750 = vmatpush1.msra.mxu0 %v616
    %751 = vmatprep.subr.mxu0 0.0
    %752 = vmatpush1.msra.mxu0 %v615
    %753 = vmatprep.subr.mxu0 0.0
    %754 = vmatpush1.msra.mxu0 %v614
    %755 = vmatprep.subr.mxu0 0.0
    %756 = vmatpush1.msra.mxu0 %v613
    %757 = vmatprep.subr.mxu0 0.0
    %758 = vmatpush1.msra.mxu0 %v612
    %759 = vmatprep.subr.mxu0 0.0
    %760 = vmatpush1.msra.mxu0 %v611
    %761 = vmatprep.subr.mxu0 0.0
    %762 = vmatpush1.msra.mxu0 %v610
    %763 = vmatprep.subr.mxu0 0.0
    %764 = vmatpush2.msra.mxu0 0.0
    %765 = vmatprep.subr.mxu0 0.0
    %766 = vmatpush2.msra.mxu0 0.0
    %767 = vmatprep.subr.mxu0 0.0
    %768 = vmatpush2.msra.mxu0 0.0
    %769 = vmatprep.subr.mxu0 0.0
    %770 = vmatpush2.msra.mxu0 0.0
    %771 = vmatprep.subr.mxu0 0.0
    %772 = vmatpush2.msra.mxu0 0.0
    %773 = vmatprep.subr.mxu0 0.0
    %774 = vmatpush2.msra.mxu0 0.0
    %775 = vmatprep.subr.mxu0 0.0
    %776 = vmatpush2.msra.mxu0 0.0
    %777 = vmatprep.subr.mxu0 0.0
    %778 = vmatpush2.msra.mxu0 0.0
    %779 = vmatprep.subr.mxu0 0.0
    %780 = vmatpush2.msra.mxu0 0.0
    %781 = vmatprep.subr.mxu0 0.0
    %782 = vmatpush2.msra.mxu0 0.0
    %783 = vmatprep.subr.mxu0 0.0
    %784 = vmatpush2.msra.mxu0 0.0
    %785 = vmatprep.subr.mxu0 0.0
    %786 = vmatpush2.msra.mxu0 0.0
    %787 = vmatprep.subr.mxu0 0.0
    %788 = vmatpush2.msra.mxu0 0.0
    %789 = vmatprep.subr.mxu0 0.0
    %790 = vmatpush2.msra.mxu0 0.0
    %791 = vmatprep.subr.mxu0 0.0
    %792 = vmatpush2.msra.mxu0 0.0
    %793 = vmatprep.subr.mxu0 0.0
    %794 = vmatpush2.msra.mxu0 0.0
    %795 = vmatprep.mubr.f32.mxu0 0.0
    %796 = vmatmul.mubr.f32.gmra.mxu0 %v87
    %v797 = vpop.f32.mrf.mxu0
    %v798 = vadd.f32 0.0, %v797
    %v799 = vpop.f32.mrf.mxu0
    %800 = vmatprep.mubr.f32.mxu0 0.0
    %801 = vmatmul.mubr.f32.gmra.mxu0 %v88
    %v802 = vpop.f32.mrf.mxu0
    %v803 = vadd.f32 0.0, %v802
    %v804 = vpop.f32.mrf.mxu0
    %805 = vmatprep.mubr.f32.mxu0 0.0
    %806 = vmatmul.mubr.f32.gmra.mxu0 %v89
    %v807 = vpop.f32.mrf.mxu0
    %v808 = vadd.f32 0.0, %v807
    %v809 = vpop.f32.mrf.mxu0
    %810 = vmatprep.mubr.f32.mxu0 0.0
    %811 = vmatmul.mubr.f32.gmra.mxu0 %v90
    %v812 = vpop.f32.mrf.mxu0
    %v813 = vadd.f32 0.0, %v812
    %v814 = vpop.f32.mrf.mxu0
    %815 = vmatprep.mubr.f32.mxu0 0.0
    %816 = vmatmul.mubr.f32.gmra.mxu0 %v91
    %v817 = vpop.f32.mrf.mxu0
    %v818 = vadd.f32 0.0, %v817
    %v819 = vpop.f32.mrf.mxu0
    %820 = vmatprep.mubr.f32.mxu0 0.0
    %821 = vmatmul.mubr.f32.gmra.mxu0 %v92
    %v822 = vpop.f32.mrf.mxu0
    %v823 = vadd.f32 0.0, %v822
    %v824 = vpop.f32.mrf.mxu0
    %825 = vmatprep.mubr.f32.mxu0 0.0
    %826 = vmatmul.mubr.f32.gmra.mxu0 %v93
    %v827 = vpop.f32.mrf.mxu0
    %v828 = vadd.f32 0.0, %v827
    %v829 = vpop.f32.mrf.mxu0
    %830 = vmatprep.mubr.f32.mxu0 0.0
    %831 = vmatmul.mubr.f32.gmra.mxu0 %v94
    %v832 = vpop.f32.mrf.mxu0
    %v833 = vadd.f32 0.0, %v832
    %v834 = vpop.f32.mrf.mxu0
    %835 = vdwg.mxu0
    %836 = vmatprep.subr.mxu0 0.0
    %837 = vmatpush1.msra.mxu0 %v142
    %838 = vmatprep.subr.mxu0 0.0
    %839 = vmatpush1.msra.mxu0 %v141
    %840 = vmatprep.subr.mxu0 0.0
    %841 = vmatpush1.msra.mxu0 %v140
    %842 = vmatprep.subr.mxu0 0.0
    %843 = vmatpush1.msra.mxu0 %v139
    %844 = vmatprep.subr.mxu0 0.0
    %845 = vmatpush1.msra.mxu0 %v138
    %846 = vmatprep.subr.mxu0 0.0
    %847 = vmatpush1.msra.mxu0 %v137
    %848 = vmatprep.subr.mxu0 0.0
    %849 = vmatpush1.msra.mxu0 %v136
    %850 = vmatprep.subr.mxu0 0.0
    %851 = vmatpush1.msra.mxu0 %v135
    %852 = vmatprep.subr.mxu0 0.0
    %853 = vmatpush1.msra.mxu0 %v134
    %854 = vmatprep.subr.mxu0 0.0
    %855 = vmatpush1.msra.mxu0 %v133
    %856 = vmatprep.subr.mxu0 0.0
    %857 = vmatpush1.msra.mxu0 %v132
    %858 = vmatprep.subr.mxu0 0.0
    %859 = vmatpush1.msra.mxu0 %v131
    %860 = vmatprep.subr.mxu0 0.0
    %861 = vmatpush1.msra.mxu0 %v130
    %862 = vmatprep.subr.mxu0 0.0
    %863 = vmatpush1.msra.mxu0 %v129
    %864 = vmatprep.subr.mxu0 0.0
    %865 = vmatpush1.msra.mxu0 %v128
    %866 = vmatprep.subr.mxu0 0.0
    %867 = vmatpush1.msra.mxu0 %v127
    %868 = vmatprep.subr.mxu0 0.0
    %869 = vmatpush2.msra.mxu0 0.0
    %870 = vmatprep.subr.mxu0 0.0
    %871 = vmatpush2.msra.mxu0 0.0
    %872 = vmatprep.subr.mxu0 0.0
    %873 = vmatpush2.msra.mxu0 0.0
    %874 = vmatprep.subr.mxu0 0.0
    %875 = vmatpush2.msra.mxu0 0.0
    %876 = vmatprep.subr.mxu0 0.0
    %877 = vmatpush2.msra.mxu0 0.0
    %878 = vmatprep.subr.mxu0 0.0
    %879 = vmatpush2.msra.mxu0 0.0
    %880 = vmatprep.subr.mxu0 0.0
    %881 = vmatpush2.msra.mxu0 0.0
    %882 = vmatprep.subr.mxu0 0.0
    %883 = vmatpush2.msra.mxu0 0.0
    %884 = vmatprep.subr.mxu0 0.0
    %885 = vmatpush2.msra.mxu0 0.0
    %886 = vmatprep.subr.mxu0 0.0
    %887 = vmatpush2.msra.mxu0 0.0
    %888 = vmatprep.subr.mxu0 0.0
    %889 = vmatpush2.msra.mxu0 0.0
    %890 = vmatprep.subr.mxu0 0.0
    %891 = vmatpush2.msra.mxu0 0.0
    %892 = vmatprep.subr.mxu0 0.0
    %893 = vmatpush2.msra.mxu0 0.0
    %894 = vmatprep.subr.mxu0 0.0
    %895 = vmatpush2.msra.mxu0 0.0
    %896 = vmatprep.subr.mxu0 0.0
    %897 = vmatpush2.msra.mxu0 0.0
    %898 = vmatprep.subr.mxu0 0.0
    %899 = vmatpush2.msra.mxu0 0.0
    %900 = vmatprep.mubr.f32.mxu0 0.0
    %901 = vmatmul.mubr.f32.gmra.mxu0 %v693
    %v902 = vpop.f32.mrf.mxu0
    %v903 = vadd.f32 0.0, %v902
    %v904 = vpop.f32.mrf.mxu0
    %905 = vmatprep.mubr.f32.mxu0 0.0
    %906 = vmatmul.mubr.f32.gmra.mxu0 %v698
    %v907 = vpop.f32.mrf.mxu0
    %v908 = vadd.f32 0.0, %v907
    %v909 = vpop.f32.mrf.mxu0
    %910 = vmatprep.mubr.f32.mxu0 0.0
    %911 = vmatmul.mubr.f32.gmra.mxu0 %v703
    %v912 = vpop.f32.mrf.mxu0
    %v913 = vadd.f32 0.0, %v912
    %v914 = vpop.f32.mrf.mxu0
    %915 = vmatprep.mubr.f32.mxu0 0.0
    %916 = vmatmul.mubr.f32.gmra.mxu0 %v708
    %v917 = vpop.f32.mrf.mxu0
    %v918 = vadd.f32 0.0, %v917
    %v919 = vpop.f32.mrf.mxu0
    %920 = vmatprep.mubr.f32.mxu0 0.0
    %921 = vmatmul.mubr.f32.gmra.mxu0 %v713
    %v922 = vpop.f32.mrf.mxu0
    %v923 = vadd.f32 0.0, %v922
    %v924 = vpop.f32.mrf.mxu0
    %925 = vmatprep.mubr.f32.mxu0 0.0
    %926 = vmatmul.mubr.f32.gmra.mxu0 %v718
    %v927 = vpop.f32.mrf.mxu0
    %v928 = vadd.f32 0.0, %v927
    %v929 = vpop.f32.mrf.mxu0
    %930 = vmatprep.mubr.f32.mxu0 0.0
    %931 = vmatmul.mubr.f32.gmra.mxu0 %v723
    %v932 = vpop.f32.mrf.mxu0
    %v933 = vadd.f32 0.0, %v932
    %v934 = vpop.f32.mrf.mxu0
    %935 = vmatprep.mubr.f32.mxu0 0.0
    %936 = vmatmul.mubr.f32.gmra.mxu0 %v728
    %v937 = vpop.f32.mrf.mxu0
    %v938 = vadd.f32 0.0, %v937
    %v939 = vpop.f32.mrf.mxu0
    %940 = vmatprep.mubr.f32.mxu0 0.0
    %941 = vmatmul.mubr.f32.gmra.mxu0 %v798
    %v942 = vpop.f32.mrf.mxu0
    %v943 = vadd.f32 0.0, %v942
    %v944 = vpop.f32.mrf.mxu0
    %945 = vmatprep.mubr.f32.mxu0 0.0
    %946 = vmatmul.mubr.f32.gmra.mxu0 %v803
    %v947 = vpop.f32.mrf.mxu0
    %v948 = vadd.f32 0.0, %v947
    %v949 = vpop.f32.mrf.mxu0
    %950 = vmatprep.mubr.f32.mxu0 0.0
    %951 = vmatmul.mubr.f32.gmra.mxu0 %v808
    %v952 = vpop.f32.mrf.mxu0
    %v953 = vadd.f32 0.0, %v952
    %v954 = vpop.f32.mrf.mxu0
    %955 = vmatprep.mubr.f32.mxu0 0.0
    %956 = vmatmul.mubr.f32.gmra.mxu0 %v813
    %v957 = vpop.f32.mrf.mxu0
    %v958 = vadd.f32 0.0, %v957
    %v959 = vpop.f32.mrf.mxu0
    %960 = vmatprep.mubr.f32.mxu0 0.0
    %961 = vmatmul.mubr.f32.gmra.mxu0 %v818
    %v962 = vpop.f32.mrf.mxu0
    %v963 = vadd.f32 0.0, %v962
    %v964 = vpop.f32.mrf.mxu0
    %965 = vmatprep.mubr.f32.mxu0 0.0
    %966 = vmatmul.mubr.f32.gmra.mxu0 %v823
    %v967 = vpop.f32.mrf.mxu0
    %v968 = vadd.f32 0.0, %v967
    %v969 = vpop.f32.mrf.mxu0
    %970 = vmatprep.mubr.f32.mxu0 0.0
    %971 = vmatmul.mubr.f32.gmra.mxu0 %v828
    %v972 = vpop.f32.mrf.mxu0
    %v973 = vadd.f32 0.0, %v972
    %v974 = vpop.f32.mrf.mxu0
    %975 = vmatprep.mubr.f32.mxu0 0.0
    %976 = vmatmul.mubr.f32.gmra.mxu0 %v833
    %v977 = vpop.f32.mrf.mxu0
    %v978 = vadd.f32 0.0, %v977
    %v979 = vpop.f32.mrf.mxu0
    %980 = vdwg.mxu0
    %v981 = vmul.f32 %v903, 0.03125
    %v982 = vmul.f32 %v908, 0.03125
    %v983 = vmul.f32 %v913, 0.03125
    %v984 = vmul.f32 %v918, 0.03125
    %v985 = vmul.f32 %v923, 0.03125
    %v986 = vmul.f32 %v928, 0.03125
    %v987 = vmul.f32 %v933, 0.03125
    %v988 = vmul.f32 %v938, 0.03125
    %v989 = vmul.f32 %v943, 0.03125
    %v990 = vmul.f32 %v948, 0.03125
    %v991 = vmul.f32 %v953, 0.03125
    %v992 = vmul.f32 %v958, 0.03125
    %v993 = vmul.f32 %v963, 0.03125
    %v994 = vmul.f32 %v968, 0.03125
    %v995 = vmul.f32 %v973, 0.03125
    %v996 = vmul.f32 %v978, 0.03125
    %v997 = vsub.f32 %v693, %v981
    %v998 = vsub.f32 %v698, %v982
    %v999 = vsub.f32 %v703, %v983
    %v1000 = vsub.f32 %v708, %v984
    %v1001 = vsub.f32 %v713, %v985
    %v1002 = vsub.f32 %v718, %v986
    %v1003 = vsub.f32 %v723, %v987
    %v1004 = vsub.f32 %v728, %v988
    %v1005 = vsub.f32 %v798, %v989
    %v1006 = vsub.f32 %v803, %v990
    %v1007 = vsub.f32 %v808, %v991
    %v1008 = vsub.f32 %v813, %v992
    %v1009 = vsub.f32 %v818, %v993
    %v1010 = vsub.f32 %v823, %v994
    %v1011 = vsub.f32 %v828, %v995
    %v1012 = vsub.f32 %v833, %v996
    %v1013 = vmul.f32 %v997, %v997
    %v1014 = vmul.f32 %v998, %v998
    %v1015 = vmul.f32 %v999, %v999
    %v1016 = vmul.f32 %v1000, %v1000
    %v1017 = vmul.f32 %v1001, %v1001
    %v1018 = vmul.f32 %v1002, %v1002
    %v1019 = vmul.f32 %v1003, %v1003
    %v1020 = vmul.f32 %v1004, %v1004
    %v1021 = vmul.f32 %v1005, %v1005
    %v1022 = vmul.f32 %v1006, %v1006
    %v1023 = vmul.f32 %v1007, %v1007
    %v1024 = vmul.f32 %v1008, %v1008
    %v1025 = vmul.f32 %v1009, %v1009
    %v1026 = vmul.f32 %v1010, %v1010
    %v1027 = vmul.f32 %v1011, %v1011
    %v1028 = vmul.f32 %v1012, %v1012
    %1029 = vmatprep.subr.mxu0 0.0
    %1030 = vmatpush1.msra.mxu0 %v142
    %1031 = vmatprep.subr.mxu0 0.0
    %1032 = vmatpush1.msra.mxu0 %v141
    %1033 = vmatprep.subr.mxu0 0.0
    %1034 = vmatpush1.msra.mxu0 %v140
    %1035 = vmatprep.subr.mxu0 0.0
    %1036 = vmatpush1.msra.mxu0 %v139
    %1037 = vmatprep.subr.mxu0 0.0
    %1038 = vmatpush1.msra.mxu0 %v138
    %1039 = vmatprep.subr.mxu0 0.0
    %1040 = vmatpush1.msra.mxu0 %v137
    %1041 = vmatprep.subr.mxu0 0.0
    %1042 = vmatpush1.msra.mxu0 %v136
    %1043 = vmatprep.subr.mxu0 0.0
    %1044 = vmatpush1.msra.mxu0 %v135
    %1045 = vmatprep.subr.mxu0 0.0
    %1046 = vmatpush1.msra.mxu0 %v134
    %1047 = vmatprep.subr.mxu0 0.0
    %1048 = vmatpush1.msra.mxu0 %v133
    %1049 = vmatprep.subr.mxu0 0.0
    %1050 = vmatpush1.msra.mxu0 %v132
    %1051 = vmatprep.subr.mxu0 0.0
    %1052 = vmatpush1.msra.mxu0 %v131
    %1053 = vmatprep.subr.mxu0 0.0
    %1054 = vmatpush1.msra.mxu0 %v130
    %1055 = vmatprep.subr.mxu0 0.0
    %1056 = vmatpush1.msra.mxu0 %v129
    %1057 = vmatprep.subr.mxu0 0.0
    %1058 = vmatpush1.msra.mxu0 %v128
    %1059 = vmatprep.subr.mxu0 0.0
    %1060 = vmatpush1.msra.mxu0 %v127
    %1061 = vmatprep.subr.mxu0 0.0
    %1062 = vmatpush2.msra.mxu0 0.0
    %1063 = vmatprep.subr.mxu0 0.0
    %1064 = vmatpush2.msra.mxu0 0.0
    %1065 = vmatprep.subr.mxu0 0.0
    %1066 = vmatpush2.msra.mxu0 0.0
    %1067 = vmatprep.subr.mxu0 0.0
    %1068 = vmatpush2.msra.mxu0 0.0
    %1069 = vmatprep.subr.mxu0 0.0
    %1070 = vmatpush2.msra.mxu0 0.0
    %1071 = vmatprep.subr.mxu0 0.0
    %1072 = vmatpush2.msra.mxu0 0.0
    %1073 = vmatprep.subr.mxu0 0.0
    %1074 = vmatpush2.msra.mxu0 0.0
    %1075 = vmatprep.subr.mxu0 0.0
    %1076 = vmatpush2.msra.mxu0 0.0
    %1077 = vmatprep.subr.mxu0 0.0
    %1078 = vmatpush2.msra.mxu0 0.0
    %1079 = vmatprep.subr.mxu0 0.0
    %1080 = vmatpush2.msra.mxu0 0.0
    %1081 = vmatprep.subr.mxu0 0.0
    %1082 = vmatpush2.msra.mxu0 0.0
    %1083 = vmatprep.subr.mxu0 0.0
    %1084 = vmatpush2.msra.mxu0 0.0
    %1085 = vmatprep.subr.mxu0 0.0
    %1086 = vmatpush2.msra.mxu0 0.0
    %1087 = vmatprep.subr.mxu0 0.0
    %1088 = vmatpush2.msra.mxu0 0.0
    %1089 = vmatprep.subr.mxu0 0.0
    %1090 = vmatpush2.msra.mxu0 0.0
    %1091 = vmatprep.subr.mxu0 0.0
    %1092 = vmatpush2.msra.mxu0 0.0
    %1093 = vmatprep.mubr.f32.mxu0 0.0
    %1094 = vmatmul.mubr.f32.gmra.mxu0 %v1013
    %v1095 = vpop.f32.mrf.mxu0
    %v1096 = vadd.f32 0.0, %v1095
    %v1097 = vpop.f32.mrf.mxu0
    %1098 = vmatprep.mubr.f32.mxu0 0.0
    %1099 = vmatmul.mubr.f32.gmra.mxu0 %v1014
    %v1100 = vpop.f32.mrf.mxu0
    %v1101 = vadd.f32 0.0, %v1100
    %v1102 = vpop.f32.mrf.mxu0
    %1103 = vmatprep.mubr.f32.mxu0 0.0
    %1104 = vmatmul.mubr.f32.gmra.mxu0 %v1015
    %v1105 = vpop.f32.mrf.mxu0
    %v1106 = vadd.f32 0.0, %v1105
    %v1107 = vpop.f32.mrf.mxu0
    %1108 = vmatprep.mubr.f32.mxu0 0.0
    %1109 = vmatmul.mubr.f32.gmra.mxu0 %v1016
    %v1110 = vpop.f32.mrf.mxu0
    %v1111 = vadd.f32 0.0, %v1110
    %v1112 = vpop.f32.mrf.mxu0
    %1113 = vmatprep.mubr.f32.mxu0 0.0
    %1114 = vmatmul.mubr.f32.gmra.mxu0 %v1017
    %v1115 = vpop.f32.mrf.mxu0
    %v1116 = vadd.f32 0.0, %v1115
    %v1117 = vpop.f32.mrf.mxu0
    %1118 = vmatprep.mubr.f32.mxu0 0.0
    %1119 = vmatmul.mubr.f32.gmra.mxu0 %v1018
    %v1120 = vpop.f32.mrf.mxu0
    %v1121 = vadd.f32 0.0, %v1120
    %v1122 = vpop.f32.mrf.mxu0
    %1123 = vmatprep.mubr.f32.mxu0 0.0
    %1124 = vmatmul.mubr.f32.gmra.mxu0 %v1019
    %v1125 = vpop.f32.mrf.mxu0
    %v1126 = vadd.f32 0.0, %v1125
    %v1127 = vpop.f32.mrf.mxu0
    %1128 = vmatprep.mubr.f32.mxu0 0.0
    %1129 = vmatmul.mubr.f32.gmra.mxu0 %v1020
    %v1130 = vpop.f32.mrf.mxu0
    %v1131 = vadd.f32 0.0, %v1130
    %v1132 = vpop.f32.mrf.mxu0
    %1133 = vmatprep.mubr.f32.mxu0 0.0
    %1134 = vmatmul.mubr.f32.gmra.mxu0 %v1021
    %v1135 = vpop.f32.mrf.mxu0
    %v1136 = vadd.f32 0.0, %v1135
    %v1137 = vpop.f32.mrf.mxu0
    %1138 = vmatprep.mubr.f32.mxu0 0.0
    %1139 = vmatmul.mubr.f32.gmra.mxu0 %v1022
    %v1140 = vpop.f32.mrf.mxu0
    %v1141 = vadd.f32 0.0, %v1140
    %v1142 = vpop.f32.mrf.mxu0
    %1143 = vmatprep.mubr.f32.mxu0 0.0
    %1144 = vmatmul.mubr.f32.gmra.mxu0 %v1023
    %v1145 = vpop.f32.mrf.mxu0
    %v1146 = vadd.f32 0.0, %v1145
    %v1147 = vpop.f32.mrf.mxu0
    %1148 = vmatprep.mubr.f32.mxu0 0.0
    %1149 = vmatmul.mubr.f32.gmra.mxu0 %v1024
    %v1150 = vpop.f32.mrf.mxu0
    %v1151 = vadd.f32 0.0, %v1150
    %v1152 = vpop.f32.mrf.mxu0
    %1153 = vmatprep.mubr.f32.mxu0 0.0
    %1154 = vmatmul.mubr.f32.gmra.mxu0 %v1025
    %v1155 = vpop.f32.mrf.mxu0
    %v1156 = vadd.f32 0.0, %v1155
    %v1157 = vpop.f32.mrf.mxu0
    %1158 = vmatprep.mubr.f32.mxu0 0.0
    %1159 = vmatmul.mubr.f32.gmra.mxu0 %v1026
    %v1160 = vpop.f32.mrf.mxu0
    %v1161 = vadd.f32 0.0, %v1160
    %v1162 = vpop.f32.mrf.mxu0
    %1163 = vmatprep.mubr.f32.mxu0 0.0
    %1164 = vmatmul.mubr.f32.gmra.mxu0 %v1027
    %v1165 = vpop.f32.mrf.mxu0
    %v1166 = vadd.f32 0.0, %v1165
    %v1167 = vpop.f32.mrf.mxu0
    %1168 = vmatprep.mubr.f32.mxu0 0.0
    %1169 = vmatmul.mubr.f32.gmra.mxu0 %v1028
    %v1170 = vpop.f32.mrf.mxu0
    %v1171 = vadd.f32 0.0, %v1170
    %v1172 = vpop.f32.mrf.mxu0
    %1173 = vdwg.mxu0
    %v1174 = vmul.f32 %v1096, 0.03125
    %v1175 = vmul.f32 %v1101, 0.03125
    %v1176 = vmul.f32 %v1106, 0.03125
    %v1177 = vmul.f32 %v1111, 0.03125
    %v1178 = vmul.f32 %v1116, 0.03125
    %v1179 = vmul.f32 %v1121, 0.03125
    %v1180 = vmul.f32 %v1126, 0.03125
    %v1181 = vmul.f32 %v1131, 0.03125
    %v1182 = vmul.f32 %v1136, 0.03125
    %v1183 = vmul.f32 %v1141, 0.03125
    %v1184 = vmul.f32 %v1146, 0.03125
    %v1185 = vmul.f32 %v1151, 0.03125
    %v1186 = vmul.f32 %v1156, 0.03125
    %v1187 = vmul.f32 %v1161, 0.03125
    %v1188 = vmul.f32 %v1166, 0.03125
    %v1189 = vmul.f32 %v1171, 0.03125
    %v1190 = vadd.f32 %v1174, 1e-12
    %v1191 = vadd.f32 %v1175, 1e-12
    %v1192 = vadd.f32 %v1176, 1e-12
    %v1193 = vadd.f32 %v1177, 1e-12
    %v1194 = vadd.f32 %v1178, 1e-12
    %v1195 = vadd.f32 %v1179, 1e-12
    %v1196 = vadd.f32 %v1180, 1e-12
    %v1197 = vadd.f32 %v1181, 1e-12
    %v1198 = vadd.f32 %v1182, 1e-12
    %v1199 = vadd.f32 %v1183, 1e-12
    %v1200 = vadd.f32 %v1184, 1e-12
    %v1201 = vadd.f32 %v1185, 1e-12
    %v1202 = vadd.f32 %v1186, 1e-12
    %v1203 = vadd.f32 %v1187, 1e-12
    %v1204 = vadd.f32 %v1188, 1e-12
    %v1205 = vadd.f32 %v1189, 1e-12
    %v1206 = vrsqrt.pop %v1190
    %v1207 = vrsqrt.pop %v1191
    %v1208 = vrsqrt.pop %v1192
    %v1209 = vrsqrt.pop %v1193
    %v1210 = vrsqrt.pop %v1194
    %v1211 = vrsqrt.pop %v1195
    %v1212 = vrsqrt.pop %v1196
    %v1213 = vrsqrt.pop %v1197
    %v1214 = vrsqrt.pop %v1198
    %v1215 = vrsqrt.pop %v1199
    %v1216 = vrsqrt.pop %v1200
    %v1217 = vrsqrt.pop %v1201
    %v1218 = vrsqrt.pop %v1202
    %v1219 = vrsqrt.pop %v1203
    %v1220 = vrsqrt.pop %v1204
    %v1221 = vrsqrt.pop %v1205
    %v1222 = vmul.f32 %v997, %v1206
    %v1223 = vmul.f32 %v998, %v1207
    %v1224 = vmul.f32 %v999, %v1208
    %v1225 = vmul.f32 %v1000, %v1209
    %v1226 = vmul.f32 %v1001, %v1210
    %v1227 = vmul.f32 %v1002, %v1211
    %v1228 = vmul.f32 %v1003, %v1212
    %v1229 = vmul.f32 %v1004, %v1213
    %v1230 = vmul.f32 %v1005, %v1214
    %v1231 = vmul.f32 %v1006, %v1215
    %v1232 = vmul.f32 %v1007, %v1216
    %v1233 = vmul.f32 %v1008, %v1217
    %v1234 = vmul.f32 %v1009, %v1218
    %v1235 = vmul.f32 %v1010, %v1219
    %v1236 = vmul.f32 %v1011, %v1220
    %v1237 = vmul.f32 %v1012, %v1221
    %v1238 = vld [vmem:[%s4] sm:$0x1]
    %v1240 = vlaneseq
    %v1241 = vshrl.u32 %v1240, 7
    %v1242 = vsub.s32 0, %v1241
    %v1243 = vrot.slane %v1238, %v1242
    %v1245 = vmul.f32 %v1222, %v1243
    %v1246 = vmul.f32 %v1223, %v1243
    %v1247 = vmul.f32 %v1224, %v1243
    %v1248 = vmul.f32 %v1225, %v1243
    %v1249 = vmul.f32 %v1226, %v1243
    %v1250 = vmul.f32 %v1227, %v1243
    %v1251 = vmul.f32 %v1228, %v1243
    %v1252 = vmul.f32 %v1229, %v1243
    %v1253 = vmul.f32 %v1230, %v1243
    %v1254 = vmul.f32 %v1231, %v1243
    %v1255 = vmul.f32 %v1232, %v1243
    %v1256 = vmul.f32 %v1233, %v1243
    %v1257 = vmul.f32 %v1234, %v1243
    %v1258 = vmul.f32 %v1235, %v1243
    %v1259 = vmul.f32 %v1236, %v1243
    %v1260 = vmul.f32 %v1237, %v1243
    %v1261 = vld [vmem:[%s5] sm:$0x1]
    %v1263 = vlaneseq
    %v1264 = vshrl.u32 %v1263, 7
    %v1265 = vsub.s32 0, %v1264
    %v1266 = vrot.slane %v1261, %v1265
    %v1268 = vadd.f32 %v1245, %v1266
    %v1269 = vadd.f32 %v1246, %v1266
    %v1270 = vadd.f32 %v1247, %v1266
    %v1271 = vadd.f32 %v1248, %v1266
    %v1272 = vadd.f32 %v1249, %v1266
    %v1273 = vadd.f32 %v1250, %v1266
    %v1274 = vadd.f32 %v1251, %v1266
    %v1275 = vadd.f32 %v1252, %v1266
    %v1276 = vadd.f32 %v1253, %v1266
    %v1277 = vadd.f32 %v1254, %v1266
    %v1278 = vadd.f32 %v1255, %v1266
    %v1279 = vadd.f32 %v1256, %v1266
    %v1280 = vadd.f32 %v1257, %v1266
    %v1281 = vadd.f32 %v1258, %v1266
    %v1282 = vadd.f32 %v1259, %v1266
    %v1283 = vadd.f32 %v1260, %v1266
    %1284 = vst [vmem:[#allocation10] sm:$0xff] %v1268
    %1285 = vst [vmem:[#allocation10 + $0x8] sm:$0xff] %v1269
    %1286 = vst [vmem:[#allocation10 + $0x10] sm:$0xff] %v1270
    %1287 = vst [vmem:[#allocation10 + $0x18] sm:$0xff] %v1271
    %1288 = vst [vmem:[#allocation10 + $0x20] sm:$0xff] %v1272
    %1289 = vst [vmem:[#allocation10 + $0x28] sm:$0xff] %v1273
    %1290 = vst [vmem:[#allocation10 + $0x30] sm:$0xff] %v1274
    %1291 = vst [vmem:[#allocation10 + $0x38] sm:$0xff] %v1275
    %1292 = vst [vmem:[#allocation10 + $0x40] sm:$0xff] %v1276
    %1293 = vst [vmem:[#allocation10 + $0x48] sm:$0xff] %v1277
    %1294 = vst [vmem:[#allocation10 + $0x50] sm:$0xff] %v1278
    %1295 = vst [vmem:[#allocation10 + $0x58] sm:$0xff] %v1279
    %1296 = vst [vmem:[#allocation10 + $0x60] sm:$0xff] %v1280
    %1297 = vst [vmem:[#allocation10 + $0x68] sm:$0xff] %v1281
    %1298 = vst [vmem:[#allocation10 + $0x70] sm:$0xff] %v1282
    %1299 = vst [vmem:[#allocation10 + $0x78] sm:$0xff] %v1283
    // Predicated region
    $region42: #{tpu_custom_call.1} parent=1 // pred_check
      _
    $region43: #{tpu_custom_call.1} parent=1 // pred_check_branch
      %1301 = sbr.rel (0) target = $region45
    $region44: #{tpu_custom_call.1} parent=1 // pred_region
      %s1303 = ssub.s32 2048, 2048
      %1304 = vsyncadd [#allocation4], %s1303
      %s1305 = sshll.u32 [#allocation10], 4
      %s1306 = int_to_ptr.vmem [resolvable:$true] %s1305
      %1311 = dma.vmem_to_hbm [thread:$0]  %s1306, 2048, %s6, [#allocation4], 128, 128, 8
    $region45: #{tpu_custom_call.1} parent=1 // pred_fallthru
      _
    // Predicated region
    $region46: #{tpu_custom_call.1} parent=1 // pred_check
      _
    $region47: #{tpu_custom_call.1} parent=1 // pred_check_branch
      %1313 = sbr.rel (0) target = $region49
    $region48: #{tpu_custom_call.1} parent=1 // pred_region
      %1314 = dma.done [#allocation4], 2048
    $region49: #{tpu_custom_call.1} parent=1 // pred_fallthru
      _
    %1315 = vsyncpa [#allocation3], 1
    %1316 = vsyncpa [#allocation6], 1
    %1317 = vsyncpa [#allocation9], 1
    %1318 = vsyncpa [#allocation4], 1

</llo_original>
